<compile_context>
chip_gen: v5e
topology: v5e:2x2
jax: 0.10.0
libtpu: 0.0.40
codegen_flags: <defaults>
</compile_context>

<pallas_src>
import math
import functools
import numpy as np

import jax
import jax.numpy as jnp
from jax.experimental import pallas as pl
from jax.experimental.pallas import tpu as pltpu


def index_weight(i, max_len):
    """Port of `index()` from model.py (returns a (1, max_len) float32 array)."""
    if i == 0:
        tmp = [x_ + 2 for x_ in range(max_len)]
    else:
        tmp = [x_ + 1 + 2 for x_ in range(i)][::-1] + \
              [x_ + 2 for x_ in range(max_len - i)]
    tmp = np.log2(np.asarray(tmp, dtype=np.float64))
    return tmp.reshape((1, max_len)).astype(np.float32)


def _choose_blocks(B, T, E2, itemsize, enc_budget_bytes=12 * 1024 * 1024):
    """Pick (Bb, Tt) for the streamed (Tt, Bb, E2) encoder block.

    Single-TC parts (v5e/v6e) want the fewest, biggest blocks; v7x wants >=2
    parallel grid steps but only 64 MiB VMEM/TC, so any extra step comes from
    a parallel batch split (kept a multiple of 8) rather than shrinking blocks
    to size 1.  The T axis is only split when the double-buffered block would
    exceed the VMEM budget; splits are multiples of 128 that divide T, so the
    dynamic scratch store stays lane-aligned and in-bounds (no OOB risk)."""
    Bb = B
    if B >= 16 and B % 16 == 0 and B * T * E2 * itemsize >= (4 << 20):
        Bb = B // 2          # two parallel batch halves for the v7x TensorCores

    Tt = T
    if 2 * T * Bb * E2 * itemsize > enc_budget_bytes and T % 128 == 0:
        tt = (enc_budget_bytes // (2 * Bb * E2 * itemsize)) // 128 * 128
        tt = int(min(max(tt, 128), T))
        while T % tt != 0:   # terminates at 128 since T % 128 == 0
            tt -= 128
        Tt = tt
    return Bb, Tt


def attention_kernel(enc_ref, wv_ref, hterm_ref, wt_ref, out_ref, score_ref):
    # enc_ref:   (Tt, Bb, E2)  encoder outputs, native time-major layout,
    #                          streamed in its stored dtype (single HBM pass)
    # wv_ref:    (1, E2)       folded weight  wv_enc = (W^T v)[Dh:]   (f32)
    # hterm_ref: (Bb, 1)       per-batch scalar  attention_vector . wv_h + b.v
    # wt_ref:    (1, T)        log2 time weights (divided, like the reference)
    # out_ref:   (Bb, 1, T)    softmax over T (lane-dense store)
    # score_ref: (Bb, T)       f32 VMEM scratch, T on lanes
    ti = pl.program_id(1)
    n_t = pl.num_programs(1)
    t_blk = enc_ref.shape[0]
    t_full = score_ref.shape[-1]

    # Cast to f32 right after the load (v5e has no bf16 VPU/EUP path).
    enc = enc_ref[...].astype(jnp.float32)               # (Tt, Bb, E2)
    wv = wv_ref[...]                                      # (1, E2)

    # VPU multiply + lane reduce over E2 (no degenerate N=1 MXU matmul), then
    # a tiny (Tt, Bb) -> (Bb, Tt) transpose so T lands on lanes in the scratch.
    part = jnp.sum(enc * wv[None, :, :], axis=-1)         # (Tt, Bb)
    part_t = part.T                                       # (Bb, Tt)

    if t_blk == t_full:
        score_ref[...] = part_t                           # single T step: static store
    else:
        off = pl.multiple_of(ti * t_blk, t_blk)           # t_blk % 128 == 0 here
        score_ref[:, pl.ds(off, t_blk)] = part_t

    # Softmax epilogue once every T block has landed in the scratch.
    @pl.when(ti == n_t - 1)
    def _():
        score = (score_ref[...] + hterm_ref[...]) / wt_ref[...]   # (Bb, T)
        # TODO(synk): optional `mask` argument (masked_fill with -1e10 before
        # softmax) not wired through; forward default is mask=None.
        m = jnp.max(score, axis=-1, keepdims=True)
        e = jnp.exp(score - m)
        denom = jnp.sum(e, axis=-1, keepdims=True)
        probs = e / denom                                  # exact normalization
        out_ref[...] = probs[:, None, :].astype(out_ref.dtype)


@functools.partial(jax.jit, static_argnums=(3, 4))
def attention_forward(attention_vector, encoder_outputs, params, time_step, max_len):
    """attention_vector: (B, Dh); encoder_outputs: (T, B, 2*Eh) (native layout).
    Returns (B, 1, T) == F.softmax(score, dim=1).unsqueeze(1)."""
    T, B, E2 = encoder_outputs.shape
    Dh = attention_vector.shape[1]
    assert max_len == T, "module semantics require max_len == encoder timestep"

    hi = jax.lax.Precision.HIGHEST
    w = params["attn_w"].astype(jnp.float32)          # (A, D), D = Dh + 2*Eh
    b = params["attn_b"].astype(jnp.float32)          # (A,)
    v = params["v"].astype(jnp.float32)               # (A,)

    # Fold v into the linear layer (exact: no nonlinearity between them).
    wv = jnp.dot(v, w, precision=hi)                  # (D,) == W^T v
    wv_h, wv_enc = wv[:Dh], wv[Dh:]                   # (Dh,), (E2,)
    bv = jnp.dot(b, v, precision=hi)                  # scalar

    # Per-batch scalar part of the score (tiny matvec, done once).
    hterm = (jnp.dot(attention_vector.astype(jnp.float32), wv_h, precision=hi)
             + bv).reshape(B, 1)                      # (B, 1)

    wv_enc_row = wv_enc.reshape(1, E2)                # (1, E2)
    wt = jnp.asarray(index_weight(time_step, max_len))  # (1, T) log2 weights

    itemsize = jnp.dtype(encoder_outputs.dtype).itemsize
    Bb, Tt = _choose_blocks(B, T, E2, itemsize)
    grid = (B // Bb, T // Tt)

    return pl.pallas_call(
        attention_kernel,
        out_shape=jax.ShapeDtypeStruct((B, 1, T), jnp.float32),
        grid_spec=pltpu.PrefetchScalarGridSpec(
            num_scalar_prefetch=0,
            grid=grid,
            in_specs=[
                # encoder_outputs streamed in native (T, B, E2) layout and its
                # stored dtype: no wrapper transpose, no wrapper upcast.
                pl.BlockSpec((Tt, Bb, E2), lambda bi, ti: (ti, bi, 0)),
                pl.BlockSpec((1, E2), lambda bi, ti: (0, 0)),
                pl.BlockSpec((Bb, 1), lambda bi, ti: (bi, 0)),
                pl.BlockSpec((1, T), lambda bi, ti: (0, 0)),
            ],
            out_specs=pl.BlockSpec((Bb, 1, T), lambda bi, ti: (bi, 0, 0)),
            scratch_shapes=[pltpu.VMEM((Bb, T), jnp.float32)],
        ),
        compiler_params=pltpu.CompilerParams(
            dimension_semantics=("parallel", "arbitrary"),
            vmem_limit_bytes=32 * 1024 * 1024,
        ),
    )(encoder_outputs, wv_enc_row, hterm, wt)


def reference_forward(attention_vector, encoder_outputs, params, time_step, max_len):
    """Pure-JAX reference mirroring the PyTorch code (unfused), for verification."""
    hi = jax.lax.Precision.HIGHEST
    T, B, _ = encoder_outputs.shape
    h = jnp.broadcast_to(attention_vector[None].astype(jnp.float32),
                         (T, B, attention_vector.shape[1]))
    h = h.transpose(1, 0, 2)
    enc = encoder_outputs.transpose(1, 0, 2).astype(jnp.float32)
    concat = jnp.concatenate([h, enc], axis=2)                                 # (B,T,D)
    s = jnp.einsum("btd,ad->bta", concat, params["attn_w"].astype(jnp.float32),
                   precision=hi) + params["attn_b"].astype(jnp.float32)        # (B,T,A)
    score = jnp.einsum("bta,a->bt", s, params["v"].astype(jnp.float32),
                       precision=hi)                                           # (B,T)
    score = score / jnp.asarray(index_weight(time_step, max_len))              # (B,T)
    return jax.nn.softmax(score, axis=1)[:, None, :]                           # (B,1,T)


def init_params(encoder_hidden_size, decoder_hidden_size, attention_hidden_size, key):
    D = encoder_hidden_size * 2 + decoder_hidden_size
    A = attention_hidden_size
    k1, k2, k3 = jax.random.split(key, 3)
    stdv_lin = 1.0 / math.sqrt(D)   # PyTorch Linear default init bound
    stdv_v = 1.0 / math.sqrt(A)
    return {
        "attn_w": jax.random.uniform(k1, (A, D), jnp.float32, -stdv_lin, stdv_lin),
        "attn_b": jax.random.uniform(k2, (A,), jnp.float32, -stdv_lin, stdv_lin),
        "v": jax.random.uniform(k3, (A,), jnp.float32, -stdv_v, stdv_v),
    }


if __name__ == "__main__":
    # Small shapes consistent with the module:
    encoder_hidden_size = 16    # encoder_outputs feature dim = 2*16 = 32
    decoder_hidden_size = 32
    attention_hidden_size = 32
    B, T = 2, 8                 # batch, encoder timestep (== max_len)
    time_step, max_len = 3, T

    key = jax.random.PRNGKey(0)
    kp, ka, ke = jax.random.split(key, 3)
    params = init_params(encoder_hidden_size, decoder_hidden_size,
                         attention_hidden_size, kp)

    attention_vector = jax.random.normal(ka, (B, decoder_hidden_size), jnp.float32)
    encoder_outputs = jax.random.normal(ke, (T, B, 2 * encoder_hidden_size), jnp.float32)

    out = attention_forward(attention_vector, encoder_outputs, params,
                            time_step, max_len)
    out = jax.block_until_ready(out)

    ref = reference_forward(attention_vector, encoder_outputs, params,
                            time_step, max_len)
    # Tolerance-based check (v-fold changes the summation order slightly).
    np.testing.assert_allclose(np.asarray(out), np.asarray(ref),
                               rtol=1e-3, atol=1e-5)
    # Exact softmax normalization: every attention row sums to 1.
    np.testing.assert_allclose(np.asarray(out).sum(axis=-1), 1.0,
                               rtol=0, atol=1e-5)
    assert out.shape == (B, 1, T)

    print("KERNEL_OK")
</pallas_src>

<mosaic_0001>
module attributes {stable_mosaic.version = 11 : i64} {
  func.func @attention_kernel(%arg0: i32, %arg1: i32, %arg2: memref<8x2x32xf32, #tpu.memory_space<vmem>>, %arg3: memref<1x32xf32, #tpu.memory_space<vmem>>, %arg4: memref<2x1xf32, #tpu.memory_space<vmem>>, %arg5: memref<1x8xf32, #tpu.memory_space<vmem>>, %arg6: memref<2x1x8xf32, #tpu.memory_space<vmem>>, %arg7: memref<2x8xf32, #tpu.memory_space<vmem>>) attributes {dimension_semantics = [#tpu.dimension_semantics<parallel>, #tpu.dimension_semantics<arbitrary>], iteration_bounds = array<i64: 1, 1>, scalar_prefetch = 0 : i64, scratch_operands = 1 : i64, tpu.core_type = #tpu.core_type<tc>, window_params = [{transform_indices = @transform_0, window_bounds = array<i64: 8, 2, 32>}, {pipeline_mode = #tpu.pipeline_mode<synchronous>, transform_indices = @transform_1, window_bounds = array<i64: 1, 32>}, {transform_indices = @transform_2, window_bounds = array<i64: 2, 1>}, {pipeline_mode = #tpu.pipeline_mode<synchronous>, transform_indices = @transform_3, window_bounds = array<i64: 1, 8>}, {transform_indices = @transform_4, window_bounds = array<i64: 2, 1, 8>}]} {
    %c0 = arith.constant 0 : index
    %c0_0 = arith.constant 0 : index
    %c0_1 = arith.constant 0 : index
    %0 = vector.load %arg2[%c0, %c0_0, %c0_1] : memref<8x2x32xf32, #tpu.memory_space<vmem>>, vector<8x2x32xf32>
    %c0_2 = arith.constant 0 : index
    %c0_3 = arith.constant 0 : index
    %1 = vector.load %arg3[%c0_2, %c0_3] : memref<1x32xf32, #tpu.memory_space<vmem>>, vector<1x32xf32>
    %2 = vector.shape_cast %1 : vector<1x32xf32> to vector<1x1x32xf32>
    %3 = vector.broadcast %2 : vector<1x1x32xf32> to vector<8x2x32xf32>
    %4 = arith.mulf %0, %3 : vector<8x2x32xf32>
    %cst = arith.constant dense<0.000000e+00> : vector<8x2xf32>
    %5 = vector.multi_reduction <add>, %4, %cst [2] : vector<8x2x32xf32> to vector<8x2xf32>
    %6 = tpu.transpose %5, [1, 0] : vector<8x2xf32> -> vector<2x8xf32>
    %c0_4 = arith.constant 0 : index
    %c0_5 = arith.constant 0 : index
    %7 = vector.load %arg7[%c0_4, %c0_5] : memref<2x8xf32, #tpu.memory_space<vmem>>, vector<2x8xf32>
    tpu.vector_store %arg7[%c0_4, %c0_5], %6 {strides = array<i32>} : memref<2x8xf32, #tpu.memory_space<vmem>>, vector<2x8xf32>,
    %c0_i32 = arith.constant 0 : i32
    %8 = arith.cmpi eq, %arg1, %c0_i32 : i32
    %9 = arith.extui %8 : i1 to i32
    %c0_i32_6 = arith.constant 0 : i32
    %10 = arith.cmpi ne, %9, %c0_i32_6 : i32
    scf.if %10 {
      %c0_7 = arith.constant 0 : index
      %c0_8 = arith.constant 0 : index
      %11 = vector.load %arg7[%c0_7, %c0_8] : memref<2x8xf32, #tpu.memory_space<vmem>>, vector<2x8xf32>
      %c0_9 = arith.constant 0 : index
      %c0_10 = arith.constant 0 : index
      %12 = vector.load %arg4[%c0_9, %c0_10] : memref<2x1xf32, #tpu.memory_space<vmem>>, vector<2x1xf32>
      %13 = vector.broadcast %12 : vector<2x1xf32> to vector<2x8xf32>
      %14 = arith.addf %11, %13 : vector<2x8xf32>
      %c0_11 = arith.constant 0 : index
      %c0_12 = arith.constant 0 : index
      %15 = vector.load %arg5[%c0_11, %c0_12] : memref<1x8xf32, #tpu.memory_space<vmem>>, vector<1x8xf32>
      %16 = vector.broadcast %15 : vector<1x8xf32> to vector<2x8xf32>
      %17 = arith.divf %14, %16 : vector<2x8xf32>
      %cst_13 = arith.constant dense<0xFF800000> : vector<2xf32>
      %18 = vector.multi_reduction <maximumf>, %17, %cst_13 [1] : vector<2x8xf32> to vector<2xf32>
      %19 = vector.shape_cast %18 : vector<2xf32> to vector<2x1xf32>
      %20 = vector.broadcast %19 : vector<2x1xf32> to vector<2x8xf32>
      %21 = arith.subf %17, %20 : vector<2x8xf32>
      %22 = math.exp %21 : vector<2x8xf32>
      %cst_14 = arith.constant dense<0.000000e+00> : vector<2xf32>
      %23 = vector.multi_reduction <add>, %22, %cst_14 [1] : vector<2x8xf32> to vector<2xf32>
      %24 = vector.shape_cast %23 : vector<2xf32> to vector<2x1xf32>
      %25 = vector.broadcast %24 : vector<2x1xf32> to vector<2x8xf32>
      %26 = arith.divf %22, %25 : vector<2x8xf32>
      %27 = vector.shape_cast %26 : vector<2x8xf32> to vector<2x1x8xf32>
      %c0_15 = arith.constant 0 : index
      %c0_16 = arith.constant 0 : index
      %c0_17 = arith.constant 0 : index
      %28 = vector.load %arg6[%c0_15, %c0_16, %c0_17] : memref<2x1x8xf32, #tpu.memory_space<vmem>>, vector<2x1x8xf32>
      tpu.vector_store %arg6[%c0_15, %c0_16, %c0_17], %27 {strides = array<i32>} : memref<2x1x8xf32, #tpu.memory_space<vmem>>, vector<2x1x8xf32>,
    } else {
    }
    return
  }
  func.func @transform_0(%arg0: i32, %arg1: i32) -> (i32, i32, i32) {
    %c0_i32 = arith.constant 0 : i32
    %c0_i32_0 = arith.constant 0 : i32
    return %arg1, %arg0, %c0_i32 : i32, i32, i32
  }
  func.func @transform_1(%arg0: i32, %arg1: i32) -> (i32, i32) {
    %c0_i32 = arith.constant 0 : i32
    %c0_i32_0 = arith.constant 0 : i32
    %c0_i32_1 = arith.constant 0 : i32
    return %c0_i32, %c0_i32_0 : i32, i32
  }
  func.func @transform_2(%arg0: i32, %arg1: i32) -> (i32, i32) {
    %c0_i32 = arith.constant 0 : i32
    %c0_i32_0 = arith.constant 0 : i32
    return %arg0, %c0_i32 : i32, i32
  }
  func.func @transform_3(%arg0: i32, %arg1: i32) -> (i32, i32) {
    %c0_i32 = arith.constant 0 : i32
    %c0_i32_0 = arith.constant 0 : i32
    %c0_i32_1 = arith.constant 0 : i32
    return %c0_i32, %c0_i32_0 : i32, i32
  }
  func.func @transform_4(%arg0: i32, %arg1: i32) -> (i32, i32, i32) {
    %c0_i32 = arith.constant 0 : i32
    %c0_i32_0 = arith.constant 0 : i32
    %c0_i32_1 = arith.constant 0 : i32
    return %arg0, %c0_i32, %c0_i32_0 : i32, i32, i32
  }
}

</mosaic_0001>

<llo_original>
// kernel: attention_forward.1
$region0: #{attention_forward.1}
  #allocation0 [shape = 'u32[]', space=smem, size = 0x4, offset = 0x4, fixed_abs, tag = 'smem constant byte address 0x4 - core index']
  #allocation1 [shape = 'u32[72,128]{1,0:T(1,128)}', space=vmem, size = 0x9000, scoped, tag = 'internal scratch']
  #allocation2 [shape = 'f32[2,8]{1,0:T(2,128)}', space=vmem, size = 0x400, scoped, tag = 'scratch operand']
  %s0 = inlined_call_operand.vmem [shape: f32[8,2,32], index: 0, kind: input, shape index: {}]
  %s1 = inlined_call_operand.vmem [shape: f32[1,32], index: 1, kind: input, shape index: {}]
  %s2 = inlined_call_operand.vmem [shape: f32[2,1], index: 2, kind: input, shape index: {}]
  %s3 = inlined_call_operand.vmem [shape: f32[1,8], index: 3, kind: input, shape index: {}]
  %s4 = inlined_call_operand.hbm [shape: f32[2,1,8], index: 4, kind: output, shape index: {}]
  %s5 = sld [smem:[#allocation0]]
  $region30: #{attention_forward.1} parent=0
    _
  %s7 = ssub.s32 1, %s5
  %s8 = scalar_select 0, %s7, %s5
  $region1: #{attention_forward.1} parent=0
    #allocation3 [shape = 'u8[1024]{0}', space=vmem, size = 0x400, scoped, tag = 'output window, operand 0, single buffered']
    #allocation4 [shape = 's32[1]{0}', space=sflag, size = 0x4, scoped, tag = 'scoped memory for attention_forward.1']
    %9 = vsyncpa [#allocation4], 0
    // Predicated region
    $region2: #{attention_forward.1} parent=1 // pred_check
      _
    $region3: #{attention_forward.1} parent=1 // pred_check_branch
      %11 = sbr.rel (0) target = $region5
    $region4: #{attention_forward.1} parent=1 // pred_region
      _
    $region5: #{attention_forward.1} parent=1 // pred_fallthru
      _
    // Predicated region
    $region6: #{attention_forward.1} parent=1 // pred_check
      _
    $region7: #{attention_forward.1} parent=1 // pred_check_branch
      %13 = sbr.rel (0) target = $region9
    $region8: #{attention_forward.1} parent=1 // pred_region
      _
    $region9: #{attention_forward.1} parent=1 // pred_fallthru
      _
    // Predicated region
    $region10: #{attention_forward.1} parent=1 // pred_check
      _
    $region11: #{attention_forward.1} parent=1 // pred_check_branch
      %15 = sbr.rel (0) target = $region13
    $region12: #{attention_forward.1} parent=1 // pred_region
      _
    $region13: #{attention_forward.1} parent=1 // pred_fallthru
      _
    // Predicated region
    $region14: #{attention_forward.1} parent=1 // pred_check
      _
    $region15: #{attention_forward.1} parent=1 // pred_check_branch
      %17 = sbr.rel (0) target = $region17
    $region16: #{attention_forward.1} parent=1 // pred_region
      _
    $region17: #{attention_forward.1} parent=1 // pred_fallthru
      _
    %v18 = vld [vmem:[%s0] sm:$0x3]
    %v19 = vld [vmem:[%s0 + $0x2] sm:$0x3]
    %v20 = vld [vmem:[%s0 + $0x4] sm:$0x3]
    %v21 = vld [vmem:[%s0 + $0x6] sm:$0x3]
    %v22 = vld [vmem:[%s0 + $0x8] sm:$0x3]
    %v23 = vld [vmem:[%s0 + $0xa] sm:$0x3]
    %v24 = vld [vmem:[%s0 + $0xc] sm:$0x3]
    %v25 = vld [vmem:[%s0 + $0xe] sm:$0x3]
    %v26 = vld [vmem:[%s1] sm:$0x1]
    %v28 = vperm.slane %v26, 0
    %v30 = vmul.f32 %v18, %v28
    %v31 = vmul.f32 %v19, %v28
    %v32 = vmul.f32 %v20, %v28
    %v33 = vmul.f32 %v21, %v28
    %v34 = vmul.f32 %v22, %v28
    %v35 = vmul.f32 %v23, %v28
    %v36 = vmul.f32 %v24, %v28
    %v37 = vmul.f32 %v25, %v28
    %vm38 = vcmask 254976
    %v39 = vsel %vm38, %v30, 0.0
    %40 = vadd.xlane.f32.xlu0 %v39
    %v41 = vpop.xlane.xlu0 %40
    %v42 = vsel %vm38, %v31, 0.0
    %43 = vadd.xlane.f32.xlu0 %v42
    %v44 = vpop.xlane.xlu0 %43
    %v45 = vsel %vm38, %v32, 0.0
    %46 = vadd.xlane.f32.xlu0 %v45
    %v47 = vpop.xlane.xlu0 %46
    %v48 = vsel %vm38, %v33, 0.0
    %49 = vadd.xlane.f32.xlu0 %v48
    %v50 = vpop.xlane.xlu0 %49
    %v51 = vsel %vm38, %v34, 0.0
    %52 = vadd.xlane.f32.xlu0 %v51
    %v53 = vpop.xlane.xlu0 %52
    %v54 = vsel %vm38, %v35, 0.0
    %55 = vadd.xlane.f32.xlu0 %v54
    %v56 = vpop.xlane.xlu0 %55
    %v57 = vsel %vm38, %v36, 0.0
    %58 = vadd.xlane.f32.xlu0 %v57
    %v59 = vpop.xlane.xlu0 %58
    %v60 = vsel %vm38, %v37, 0.0
    %61 = vadd.xlane.f32.xlu0 %v60
    %v62 = vpop.xlane.xlu0 %61
    %v71 = vlaneseq
    %v72 = vand.u32 %v71, 127
    %v73 = vperm.slane %v41, %v72
    %v74 = vperm.slane %v44, %v72
    %v75 = vperm.slane %v47, %v72
    %v76 = vperm.slane %v50, %v72
    %v77 = vperm.slane %v53, %v72
    %v78 = vperm.slane %v56, %v72
    %v79 = vperm.slane %v59, %v72
    %v80 = vperm.slane %v62, %v72
    %vm81 = vcmask 1041409
    %v82 = vsel %vm81, %v74, %v73
    %vm83 = vcmask 1042434
    %v84 = vsel %vm83, %v75, %v82
    %vm85 = vcmask 1043459
    %v86 = vsel %vm85, %v76, %v84
    %vm87 = vcmask 1044484
    %v88 = vsel %vm87, %v77, %v86
    %vm89 = vcmask 1045509
    %v90 = vsel %vm89, %v78, %v88
    %vm91 = vcmask 1046534
    %v92 = vsel %vm91, %v79, %v90
    %vm93 = vcmask 1047559
    %v94 = vsel %vm93, %v80, %v92
    %96 = vxpose.xlu0.b32.start [1/16] %v94, 128
    %97 = vxpose.xlu0.b32.cont [2/16] 0.0, 128
    %98 = vxpose.xlu0.b32.cont [3/16] 0.0, 128
    %99 = vxpose.xlu0.b32.cont [4/16] 0.0, 128
    %100 = vxpose.xlu0.b32.cont [5/16] 0.0, 128
    %101 = vxpose.xlu0.b32.cont [6/16] 0.0, 128
    %102 = vxpose.xlu0.b32.cont [7/16] 0.0, 128
    %103 = vxpose.xlu0.b32.cont [8/16] 0.0, 128
    %104 = vxpose.xlu0.b32.cont [9/16] 0.0, 128
    %105 = vxpose.xlu0.b32.cont [10/16] 0.0, 128
    %106 = vxpose.xlu0.b32.cont [11/16] 0.0, 128
    %107 = vxpose.xlu0.b32.cont [12/16] 0.0, 128
    %108 = vxpose.xlu0.b32.cont [13/16] 0.0, 128
    %109 = vxpose.xlu0.b32.cont [14/16] 0.0, 128
    %110 = vxpose.xlu0.b32.cont [15/16] 0.0, 128
    %111 = vxpose.xlu0.b32.end [16/16] 0.0, 128
    %v112 = vpop.trf.xlu0
    %v113 = vpop.trf.xlu0
    %v114 = vpop.trf.xlu0
    %v115 = vpop.trf.xlu0
    %v116 = vpop.trf.xlu0
    %v117 = vpop.trf.xlu0
    %v118 = vpop.trf.xlu0
    %v119 = vpop.trf.xlu0
    %v120 = vpop.trf.xlu0
    %v121 = vpop.trf.xlu0
    %v122 = vpop.trf.xlu0
    %v123 = vpop.trf.xlu0
    %v124 = vpop.trf.xlu0
    %v125 = vpop.trf.xlu0
    %v126 = vpop.trf.xlu0
    %v127 = vpop.trf.xlu0
    %vm128 = vcmask 58368
    %129 = vst.msk [vmem:[#allocation2] sm:$0x3] %vm128, %v112
    %p130 = scmp.eq.s32.totalorder 0, 0
    // Predicated region
    $region18: #{attention_forward.1} parent=1 // pred_check
      %p131 = pneg %p130
    $region19: #{attention_forward.1} parent=1 // pred_check_branch
      %133 = sbr.rel (%p131) target = $region21
    $region20: #{attention_forward.1} parent=1 // pred_region
      %v134 = vld [vmem:[#allocation2] sm:$0x3]
      %v135 = vld [vmem:[%s2] sm:$0x3]
      %137 = vset.pattern.permute.xlu0 0
      %138 = vperm.xlu0 %137, %v135
      %v139 = vpop.permute.xlu0 %138
      %v141 = vadd.f32 %v134, %v139
      %v142 = vld [vmem:[%s3] sm:$0x1]
      %v144 = vperm.slane %v142, 0
      %v146 = vrcp.pop %v144
      %v147 = vmul.f32 %v144, %v146
      %v148 = vsub.f32 1.0, %v147
      %v149 = vmul.f32 %v146, %v148
      %v150 = vadd.f32 %v146, %v149
      %vm151 = vweird.f32 %v144
      %vm152 = vweird.f32 %v146
      %vm153 = vmor %vm151, %vm152
      %v154 = vsel %vm153, %v146, %v150
      %v155 = vand.u32 2147483647, %v144
      %vm156 = vcmp.eq.f32.partialorder %v155, 8.507059e+37
      %v157 = vand.u32 %v144, 2147483648
      %v158 = vor.u32 1.1754944e-38, %v157
      %v159 = vsel %vm156, %v158, %v154
      %v160 = vmul.f32 %v141, %v159
      %v161 = vsel %vm128, %v160, -inf
      %162 = vmax.xlane.f32.xlu0 %v161
      %v163 = vpop.xlane.xlu0 %162
      %v164 = vsub.f32 %v160, %v163
      %v165 = vmul.f32 %v164, 1.442695
      %v166 = vpow.pop %v165
      %v167 = vsel %vm128, %v166, 0.0
      %168 = vadd.xlane.f32.xlu0 %v167
      %v169 = vpop.xlane.xlu0 %168
      %v170 = vrcp.pop %v169
      %v171 = vmul.f32 %v169, %v170
      %v172 = vsub.f32 1.0, %v171
      %v173 = vmul.f32 %v170, %v172
      %v174 = vadd.f32 %v170, %v173
      %vm175 = vweird.f32 %v169
      %vm176 = vweird.f32 %v170
      %vm177 = vmor %vm175, %vm176
      %v178 = vsel %vm177, %v170, %v174
      %v179 = vand.u32 2147483647, %v169
      %vm180 = vcmp.eq.f32.partialorder %v179, 8.507059e+37
      %v181 = vand.u32 %v169, 2147483648
      %v182 = vor.u32 1.1754944e-38, %v181
      %v183 = vsel %vm180, %v182, %v178
      %v184 = vmul.f32 %v166, %v183
      %v186 = vrot.slane %v184, 1
      %vm188 = vcmask 57344
      %189 = vst.msk [vmem:[#allocation3] sm:$0x1] %vm188, %v184
      %190 = vst.msk [vmem:[#allocation3 + $0x1] sm:$0x1] %vm188, %v186
    $region21: #{attention_forward.1} parent=1 // pred_fallthru
      _
    // Predicated region
    $region22: #{attention_forward.1} parent=1 // pred_check
      _
    $region23: #{attention_forward.1} parent=1 // pred_check_branch
      %192 = sbr.rel (0) target = $region25
    $region24: #{attention_forward.1} parent=1 // pred_region
      %194 = vsyncadd [#allocation4], 0
      %s195 = sshll.u32 [#allocation3], 4
      %s196 = int_to_ptr.vmem [resolvable:$true] %s195
      %s197 = sshll.u32 %s4, 4
      %s198 = int_to_ptr.hbm [resolvable:$true] %s197
      %203 = dma.vmem_to_hbm [thread:$0]  %s196, 32, %s198, [#allocation4], 16, 16, 1
    $region25: #{attention_forward.1} parent=1 // pred_fallthru
      _
    // Predicated region
    $region26: #{attention_forward.1} parent=1 // pred_check
      _
    $region27: #{attention_forward.1} parent=1 // pred_check_branch
      %205 = sbr.rel (0) target = $region29
    $region28: #{attention_forward.1} parent=1 // pred_region
      %207 = dma.done [#allocation4], 32
    $region29: #{attention_forward.1} parent=1 // pred_fallthru
      _
    %208 = vsyncpa [#allocation4], 1

</llo_original>
